<compile_context>
chip_gen: v6e
topology: v6e:2x2x1
jax: 0.10.0
libtpu: 0.0.40
codegen_flags: <defaults>
</compile_context>

<pallas_src>
import functools

import jax
import jax.numpy as jnp
import numpy as np
from jax.experimental import pallas as pl
from jax.experimental.pallas import tpu as pltpu


def _round_up(x, m):
    return (x + m - 1) // m * m


def _tv_partial_kernel(x_ref, out_ref, *, n128, needs_mask):
    """One grid step: stream a (T, tm, 128) slab, emit an (8, 128) partial sum."""
    T, tm, _ = x_ref.shape
    x = x_ref[...].astype(jnp.float32)          # per-tile upcast; DMA stays in native dtype
    # Finite difference along the leading contrast axis: x[1:], x[:-1] are full
    # aligned (tm, 128) slabs -> pure VPU subtract / abs / add.
    a = jnp.abs(x[1:] - x[:-1])                 # (T-1, tm, 128)
    a = jnp.sum(a, axis=0)                      # (tm, 128)
    if needs_mask:
        # Last (partial) block: rows at or past n128 are out-of-bounds garbage.
        row = (jax.lax.broadcasted_iota(jnp.int32, (tm, 128), 0)
               + pl.program_id(0) * tm)
        a = jnp.where(row < n128, a, 0.0)
    # Fold tm rows down to one lane-dense (8, 128) partial and store it.
    out_ref[...] = jnp.sum(a.reshape(tm // 8, 8, 128), axis=0)


def contrast_tv_regularization(params, *, target_block_bytes=4 * 1024 * 1024):
    """mean(|params[1:] - params[:-1]|) as a float32 scalar."""
    # TODO(synk): complex-valued params (magnitude TV over complex images) are
    # not handled; real-valued path only.
    T = params.shape[0]
    assert T >= 2, "need at least two contrast phases for a finite difference"

    x = params.reshape(T, -1)                   # free reshape, native dtype
    N = x.shape[1]

    # 3-D lane-dense view (T, n128, 128). Only pad when N is not a multiple of
    # 8*128; zero-padded elements are identical across T so their diff is 0.
    Np = _round_up(N, 8 * 128)
    if Np != N:
        x = jnp.pad(x, ((0, 0), (0, Np - N)))
    n128 = Np // 128
    x3 = x.reshape(T, n128, 128)

    # Pick tm (multiple of 8, <= n128) so one input block is ~target_block_bytes.
    itemsize = jnp.dtype(x3.dtype).itemsize
    tm = target_block_bytes // (T * 128 * itemsize)
    tm = max(8, (tm // 8) * 8)
    tm = min(tm, n128)
    num_tiles = pl.cdiv(n128, tm)
    needs_mask = (num_tiles * tm != n128)

    kernel = functools.partial(_tv_partial_kernel, n128=n128, needs_mask=needs_mask)

    partials = pl.pallas_call(
        kernel,
        out_shape=jax.ShapeDtypeStruct((num_tiles * 8, 128), jnp.float32),
        grid=(num_tiles,),
        in_specs=[pl.BlockSpec((T, tm, 128), lambda j: (0, j, 0))],
        out_specs=pl.BlockSpec((8, 128), lambda j: (j, 0)),
        compiler_params=pltpu.CompilerParams(
            dimension_semantics=("parallel",),
            vmem_limit_bytes=32 * 1024 * 1024,
        ),
    )(x3)

    inv_count = 1.0 / float((T - 1) * N)        # divisor uses the TRUE element count
    return (jnp.sum(partials) * inv_count).astype(jnp.float32)


class ContrastTVRegularization:
    """Mirror of the PyTorch module (forward path)."""

    def __call__(self, params):
        return contrast_tv_regularization(params)


if __name__ == "__main__":
    key = jax.random.PRNGKey(0)
    # 5 contrast phases, 4 channels, 16x16 spatial.
    params = jax.random.normal(key, (5, 4, 16, 16), dtype=jnp.float32)

    model = ContrastTVRegularization()
    out = model(params)
    out = jax.block_until_ready(out)
    assert out.shape == () and out.dtype == jnp.float32

    ref = jnp.mean(jnp.abs(params[1:] - params[:-1]))
    np.testing.assert_allclose(np.asarray(out), np.asarray(ref),
                               rtol=1e-5, atol=1e-6)

    print("KERNEL_OK")
</pallas_src>

<mosaic_0001>
module attributes {stable_mosaic.version = 11 : i64} {
  func.func @_tv_partial_kernel(%arg0: i32, %arg1: memref<5x8x128xf32, #tpu.memory_space<vmem>>, %arg2: memref<8x128xf32, #tpu.memory_space<vmem>>) attributes {dimension_semantics = [#tpu.dimension_semantics<parallel>], iteration_bounds = array<i64: 1>, scalar_prefetch = 0 : i64, scratch_operands = 0 : i64, tpu.core_type = #tpu.core_type<tc>, window_params = [{transform_indices = @transform_0, window_bounds = array<i64: 5, 8, 128>}, {transform_indices = @transform_1, window_bounds = array<i64: 8, 128>}]} {
    %c0 = arith.constant 0 : index
    %c0_0 = arith.constant 0 : index
    %c0_1 = arith.constant 0 : index
    %0 = vector.load %arg1[%c0, %c0_0, %c0_1] : memref<5x8x128xf32, #tpu.memory_space<vmem>>, vector<5x8x128xf32>
    %1 = vector.extract_strided_slice %0 {offsets = [1, 0, 0], sizes = [4, 8, 128], strides = [1, 1, 1]} : vector<5x8x128xf32> to vector<4x8x128xf32>
    %2 = vector.extract_strided_slice %0 {offsets = [0, 0, 0], sizes = [4, 8, 128], strides = [1, 1, 1]} : vector<5x8x128xf32> to vector<4x8x128xf32>
    %3 = arith.subf %1, %2 : vector<4x8x128xf32>
    %4 = math.absf %3 : vector<4x8x128xf32>
    %cst = arith.constant dense<0.000000e+00> : vector<8x128xf32>
    %5 = vector.multi_reduction <add>, %4, %cst [0] : vector<4x8x128xf32> to vector<8x128xf32>
    %6 = vector.shape_cast %5 : vector<8x128xf32> to vector<1x8x128xf32>
    %cst_2 = arith.constant dense<0.000000e+00> : vector<8x128xf32>
    %7 = vector.multi_reduction <add>, %6, %cst_2 [0] : vector<1x8x128xf32> to vector<8x128xf32>
    %c0_3 = arith.constant 0 : index
    %c0_4 = arith.constant 0 : index
    %8 = vector.load %arg2[%c0_3, %c0_4] : memref<8x128xf32, #tpu.memory_space<vmem>>, vector<8x128xf32>
    tpu.vector_store %arg2[%c0_3, %c0_4], %7 {strides = array<i32>} : memref<8x128xf32, #tpu.memory_space<vmem>>, vector<8x128xf32>,
    return
  }
  func.func @transform_0(%arg0: i32) -> (i32, i32, i32) {
    %c0_i32 = arith.constant 0 : i32
    %c0_i32_0 = arith.constant 0 : i32
    %c0_i32_1 = arith.constant 0 : i32
    return %c0_i32, %arg0, %c0_i32_0 : i32, i32, i32
  }
  func.func @transform_1(%arg0: i32) -> (i32, i32) {
    %c0_i32 = arith.constant 0 : i32
    %c0_i32_0 = arith.constant 0 : i32
    return %arg0, %c0_i32 : i32, i32
  }
}

</mosaic_0001>

<llo_original>
// kernel: tpu_custom_call.1
$region0: #{tpu_custom_call.1}
  #allocation0 [shape = 'u32[]', space=smem, size = 0x4, offset = 0x4, fixed_abs, tag = 'smem constant byte address 0x4 - core index']
  #allocation1 [shape = 'u32[144,128]{1,0:T(1,128)}', space=vmem, size = 0x12000, scoped, tag = 'internal scratch']
  %s0 = inlined_call_operand.hbm [shape: f32[5,8,128], index: 0, kind: input, shape index: {}]
  %s1 = inlined_call_operand.hbm [shape: f32[8,128], index: 1, kind: output, shape index: {}]
  %s2 = sld [smem:[#allocation0]]
  $region18: #{tpu_custom_call.1} parent=0
    _
  %s4 = ssub.s32 1, %s2
  %s5 = scalar_select 0, %s4, %s2
  $region1: #{tpu_custom_call.1} parent=0
    #allocation2 [shape = 'u8[20480]{0}', space=vmem, size = 0x5000, scoped, tag = 'input window, operand 0, single buffered']
    #allocation3 [shape = 's32[1]{0}', space=sflag, size = 0x4, scoped, tag = 'scoped memory for tpu_custom_call.1']
    #allocation4 [shape = 's32[1]{0}', space=sflag, size = 0x4, scoped, tag = 'scoped memory for tpu_custom_call.1']
    #allocation5 [shape = 'u8[4096]{0}', space=vmem, size = 0x1000, scoped, tag = 'output window, operand 0, single buffered']
    %6 = vsyncpa [#allocation3], 0
    %7 = vsyncpa [#allocation4], 0
    // Predicated region
    $region2: #{tpu_custom_call.1} parent=1 // pred_check
      _
    $region3: #{tpu_custom_call.1} parent=1 // pred_check_branch
      %9 = sbr.rel (0) target = $region5
    $region4: #{tpu_custom_call.1} parent=1 // pred_region
      %s11 = ssub.s32 640, 640
      %12 = vsyncadd [#allocation3], %s11
      %s13 = sshll.u32 [#allocation2], 4
      %s14 = int_to_ptr.vmem [resolvable:$true] %s13
      %19 = dma.hbm_to_vmem [thread:$0]  %s0, 640, %s14, [#allocation3], 128, 128, 8
    $region5: #{tpu_custom_call.1} parent=1 // pred_fallthru
      _
    // Predicated region
    $region6: #{tpu_custom_call.1} parent=1 // pred_check
      _
    $region7: #{tpu_custom_call.1} parent=1 // pred_check_branch
      %21 = sbr.rel (0) target = $region9
    $region8: #{tpu_custom_call.1} parent=1 // pred_region
      %22 = dma.done [#allocation3], 640
    $region9: #{tpu_custom_call.1} parent=1 // pred_fallthru
      _
    %v23 = vld [vmem:[#allocation2] sm:$0xff]
    %v24 = vld [vmem:[#allocation2 + $0x8] sm:$0xff]
    %v25 = vld [vmem:[#allocation2 + $0x10] sm:$0xff]
    %v26 = vld [vmem:[#allocation2 + $0x18] sm:$0xff]
    %v27 = vld [vmem:[#allocation2 + $0x20] sm:$0xff]
    %v28 = vsub.f32 %v24, %v23
    %v29 = vsub.f32 %v25, %v24
    %v30 = vsub.f32 %v26, %v25
    %v31 = vsub.f32 %v27, %v26
    %v32 = vand.u32 2147483647, %v28
    %v33 = vand.u32 2147483647, %v29
    %v34 = vand.u32 2147483647, %v30
    %v35 = vand.u32 2147483647, %v31
    %v36 = vadd.f32 %v32, %v33
    %v37 = vadd.f32 %v36, %v34
    %v38 = vadd.f32 %v37, %v35
    %v39 = vadd.f32 %v38, 0.0
    %40 = vst [vmem:[#allocation5] sm:$0xff] %v39
    // Predicated region
    $region10: #{tpu_custom_call.1} parent=1 // pred_check
      _
    $region11: #{tpu_custom_call.1} parent=1 // pred_check_branch
      %42 = sbr.rel (0) target = $region13
    $region12: #{tpu_custom_call.1} parent=1 // pred_region
      %s44 = ssub.s32 128, 128
      %45 = vsyncadd [#allocation4], %s44
      %s47 = sshll.u32 [#allocation5], 4
      %s48 = int_to_ptr.vmem [resolvable:$true] %s47
      %50 = dma.vmem_to_hbm [thread:$0]  %s48, 128, %s1, [#allocation4]
    $region13: #{tpu_custom_call.1} parent=1 // pred_fallthru
      _
    // Predicated region
    $region14: #{tpu_custom_call.1} parent=1 // pred_check
      _
    $region15: #{tpu_custom_call.1} parent=1 // pred_check_branch
      %52 = sbr.rel (0) target = $region17
    $region16: #{tpu_custom_call.1} parent=1 // pred_region
      %53 = dma.done [#allocation4], 128
    $region17: #{tpu_custom_call.1} parent=1 // pred_fallthru
      _
    %54 = vsyncpa [#allocation3], 1
    %55 = vsyncpa [#allocation4], 1

</llo_original>
